<compile_context>
chip_gen: v7x
topology: tpu7x:2x2x1
jax: 0.10.0
libtpu: 0.0.40
codegen_flags: <defaults>
</compile_context>

<pallas_src>
import functools
import math

import jax
import jax.numpy as jnp
from jax import lax
from jax.experimental import pallas as pl
from jax.experimental.pallas import tpu as pltpu


def _dice_loss_kernel(p_ref, l_ref, dice_ref, inter_acc, union_acc,
                      *, d_valid, needs_mask):
    # p_ref / l_ref : (1, TILE_R, 128) block of one sample's features
    # dice_ref      : (1, 8, 128) per-sample dice tile (resident across j)
    # inter_acc     : (1, 1) running sum of sigmoid(p) * label
    # union_acc     : (1, 1) running sum of sigmoid(p) + label
    j = pl.program_id(1)

    @pl.when(j == 0)
    def _():
        inter_acc[...] = jnp.zeros_like(inter_acc)
        union_acc[...] = jnp.zeros_like(union_acc)

    p = jax.nn.sigmoid(p_ref[0].astype(jnp.float32))   # (TILE_R, 128)
    l = l_ref[0].astype(jnp.float32)

    if needs_mask:
        # Mask the ragged tail (pad columns and/or rows of an OOB last block).
        tile_r = p.shape[0]
        row = lax.broadcasted_iota(jnp.int32, p.shape, 0)
        lane = lax.broadcasted_iota(jnp.int32, p.shape, 1)
        flat = (j * tile_r + row) * 128 + lane
        valid = flat < d_valid
        p = jnp.where(valid, p, 0.0)
        l = jnp.where(valid, l, 0.0)

    inter_acc[...] += jnp.sum(p * l, keepdims=True)   # (1, 1)
    union_acc[...] += jnp.sum(p + l, keepdims=True)   # fused single reduction

    @pl.when(j == pl.num_programs(1) - 1)
    def _():
        eps = jnp.float32(1e-08)
        dice = (2.0 * inter_acc[...] + eps) / (union_acc[...] + eps)  # (1, 1)
        dice_ref[...] = jnp.broadcast_to(dice.reshape(1, 1, 1), dice_ref.shape)


def dice_loss(predict, label, *, target_block_bytes=2 * 1024 * 1024):
    """Pallas equivalent of DiceLoss.forward(predict, label). Returns a scalar."""
    n = predict.shape[0]
    d = math.prod(predict.shape[1:])

    p2 = predict.reshape(n, d)
    l2 = label.reshape(n, d)

    # Only pad to a lane multiple when strictly needed (<128 extra columns);
    # padded / out-of-bounds elements are masked inside the kernel.
    d_lanes = pl.cdiv(d, 128) * 128
    if d_lanes != d:
        p2 = jnp.pad(p2, ((0, 0), (0, d_lanes - d)))
        l2 = jnp.pad(l2, ((0, 0), (0, d_lanes - d)))
    r = d_lanes // 128
    p3 = p2.reshape(n, r, 128)
    l3 = l2.reshape(n, r, 128)

    # Row-tile sizing: ~target_block_bytes per (f32) input block, sublane-aligned.
    max_rows = max(8, (target_block_bytes // (128 * 4)) // 8 * 8)
    if r <= max_rows:
        tile_r, num_tiles = r, 1           # full dim -> no alignment constraint
    else:
        tile_r = max_rows                  # multiple of 8
        num_tiles = pl.cdiv(r, tile_r)

    needs_mask = (num_tiles * tile_r * 128) != d

    kernel = functools.partial(_dice_loss_kernel, d_valid=d,
                               needs_mask=needs_mask)

    in_bytes = p3.size * p3.dtype.itemsize + l3.size * l3.dtype.itemsize
    out_bytes = n * 8 * 128 * 4
    cost = pl.CostEstimate(flops=6 * n * d,
                           transcendentals=n * d,
                           bytes_accessed=in_bytes + out_bytes)

    dice_tiles = pl.pallas_call(
        kernel,
        out_shape=jax.ShapeDtypeStruct((n, 8, 128), jnp.float32),
        grid_spec=pltpu.PrefetchScalarGridSpec(
            num_scalar_prefetch=0,
            grid=(n, num_tiles),
            in_specs=[
                pl.BlockSpec((1, tile_r, 128), lambda i, j: (i, j, 0)),
                pl.BlockSpec((1, tile_r, 128), lambda i, j: (i, j, 0)),
            ],
            out_specs=pl.BlockSpec((1, 8, 128), lambda i, j: (i, 0, 0)),
            scratch_shapes=[
                pltpu.VMEM((1, 1), jnp.float32),
                pltpu.VMEM((1, 1), jnp.float32),
            ],
        ),
        compiler_params=pltpu.CompilerParams(
            dimension_semantics=("parallel", "arbitrary"),
            vmem_limit_bytes=32 * 1024 * 1024,
        ),
        cost_estimate=cost,
    )(p3, l3)

    dice = dice_tiles[:, 0, 0]             # (N,) per-sample dice
    return 1.0 - jnp.mean(dice)            # trivial mean done in plain JAX


def _dice_loss_ref(predict, label):
    """Pure-JAX reference matching the PyTorch module exactly."""
    n = predict.shape[0]
    p = jax.nn.sigmoid(predict).reshape(n, -1)
    l = label.reshape(n, -1)
    inter = jnp.sum(p * l, axis=1)
    union = jnp.sum(p, axis=1) + jnp.sum(l, axis=1)
    dice = (2.0 * inter + 1e-08) / (union + 1e-08)
    return 1.0 - jnp.mean(dice)


if __name__ == "__main__":
    key = jax.random.PRNGKey(0)
    k1, k2 = jax.random.split(key)

    # Small shapes consistent with a segmentation logit/label pair (NCHW).
    N, C, H, W = 2, 4, 16, 16
    predict = jax.random.normal(k1, (N, C, H, W), dtype=jnp.float32)
    label = (jax.random.uniform(k2, (N, C, H, W)) > 0.5).astype(jnp.float32)

    out = dice_loss(predict, label)
    out = jax.block_until_ready(out)

    ref = _dice_loss_ref(predict, label)
    assert jnp.allclose(out, ref, atol=1e-5, rtol=1e-5), (out, ref)

    print("KERNEL_OK")
</pallas_src>

<mosaic_0001>
module attributes {stable_mosaic.version = 11 : i64} {
  func.func @_dice_loss_kernel(%arg0: i32, %arg1: i32, %arg2: memref<1x8x128xf32, #tpu.memory_space<vmem>>, %arg3: memref<1x8x128xf32, #tpu.memory_space<vmem>>, %arg4: memref<1x8x128xf32, #tpu.memory_space<vmem>>, %arg5: memref<1x1xf32, #tpu.memory_space<vmem>>, %arg6: memref<1x1xf32, #tpu.memory_space<vmem>>) attributes {dimension_semantics = [#tpu.dimension_semantics<parallel>, #tpu.dimension_semantics<arbitrary>], iteration_bounds = array<i64: 2, 1>, scalar_prefetch = 0 : i64, scratch_operands = 2 : i64, tpu.core_type = #tpu.core_type<tc>, window_params = [{transform_indices = @transform_0, window_bounds = array<i64: 1, 8, 128>}, {transform_indices = @transform_1, window_bounds = array<i64: 1, 8, 128>}, {transform_indices = @transform_2, window_bounds = array<i64: 1, 8, 128>}]} {
    %c0_i32 = arith.constant 0 : i32
    %0 = arith.cmpi eq, %arg1, %c0_i32 : i32
    %1 = arith.extui %0 : i1 to i32
    %c0_i32_0 = arith.constant 0 : i32
    %2 = arith.cmpi ne, %1, %c0_i32_0 : i32
    scf.if %2 {
      %cst_18 = arith.constant 0.000000e+00 : f32
      %33 = vector.broadcast %cst_18 : f32 to vector<1x1xf32>
      %c0_19 = arith.constant 0 : index
      %c0_20 = arith.constant 0 : index
      %34 = vector.load %arg5[%c0_19, %c0_20] : memref<1x1xf32, #tpu.memory_space<vmem>>, vector<1x1xf32>
      tpu.vector_store %arg5[%c0_19, %c0_20], %33 {strides = array<i32>} : memref<1x1xf32, #tpu.memory_space<vmem>>, vector<1x1xf32>,
      %cst_21 = arith.constant 0.000000e+00 : f32
      %35 = vector.broadcast %cst_21 : f32 to vector<1x1xf32>
      %c0_22 = arith.constant 0 : index
      %c0_23 = arith.constant 0 : index
      %36 = vector.load %arg6[%c0_22, %c0_23] : memref<1x1xf32, #tpu.memory_space<vmem>>, vector<1x1xf32>
      tpu.vector_store %arg6[%c0_22, %c0_23], %35 {strides = array<i32>} : memref<1x1xf32, #tpu.memory_space<vmem>>, vector<1x1xf32>,
    } else {
    }
    %c0 = arith.constant 0 : index
    %c0_1 = arith.constant 0 : index
    %c0_2 = arith.constant 0 : index
    %3 = vector.load %arg2[%c0, %c0_1, %c0_2] : memref<1x8x128xf32, #tpu.memory_space<vmem>>, vector<1x8x128xf32>
    %4 = vector.shape_cast %3 : vector<1x8x128xf32> to vector<8x128xf32>
    %5 = arith.negf %4 : vector<8x128xf32>
    %6 = math.exp %5 : vector<8x128xf32>
    %cst = arith.constant 1.000000e+00 : f32
    %7 = vector.broadcast %cst : f32 to vector<8x128xf32>
    %8 = arith.addf %7, %6 : vector<8x128xf32>
    %9 = arith.divf %7, %8 : vector<8x128xf32>
    %c0_3 = arith.constant 0 : index
    %c0_4 = arith.constant 0 : index
    %c0_5 = arith.constant 0 : index
    %10 = vector.load %arg3[%c0_3, %c0_4, %c0_5] : memref<1x8x128xf32, #tpu.memory_space<vmem>>, vector<1x8x128xf32>
    %11 = vector.shape_cast %10 : vector<1x8x128xf32> to vector<8x128xf32>
    %c0_6 = arith.constant 0 : index
    %c0_7 = arith.constant 0 : index
    %12 = vector.load %arg5[%c0_6, %c0_7] : memref<1x1xf32, #tpu.memory_space<vmem>>, vector<1x1xf32>
    %13 = arith.mulf %9, %11 : vector<8x128xf32>
    %14 = vector.shape_cast %13 : vector<8x128xf32> to vector<1x8x128xf32>
    %cst_8 = arith.constant dense<0.000000e+00> : vector<1xf32>
    %15 = vector.multi_reduction <add>, %14, %cst_8 [1, 2] : vector<1x8x128xf32> to vector<1xf32>
    %16 = vector.shape_cast %15 : vector<1xf32> to vector<1x1x1xf32>
    %17 = vector.extract %16[0, 0, 0] : f32 from vector<1x1x1xf32>
    %18 = vector.broadcast %17 : f32 to vector<1x1xf32>
    %19 = arith.addf %12, %18 : vector<1x1xf32>
    %c0_9 = arith.constant 0 : index
    %c0_10 = arith.constant 0 : index
    %20 = vector.load %arg5[%c0_9, %c0_10] : memref<1x1xf32, #tpu.memory_space<vmem>>, vector<1x1xf32>
    tpu.vector_store %arg5[%c0_9, %c0_10], %19 {strides = array<i32>} : memref<1x1xf32, #tpu.memory_space<vmem>>, vector<1x1xf32>,
    %c0_11 = arith.constant 0 : index
    %c0_12 = arith.constant 0 : index
    %21 = vector.load %arg6[%c0_11, %c0_12] : memref<1x1xf32, #tpu.memory_space<vmem>>, vector<1x1xf32>
    %22 = arith.addf %9, %11 : vector<8x128xf32>
    %23 = vector.shape_cast %22 : vector<8x128xf32> to vector<1x8x128xf32>
    %cst_13 = arith.constant dense<0.000000e+00> : vector<1xf32>
    %24 = vector.multi_reduction <add>, %23, %cst_13 [1, 2] : vector<1x8x128xf32> to vector<1xf32>
    %25 = vector.shape_cast %24 : vector<1xf32> to vector<1x1x1xf32>
    %26 = vector.extract %25[0, 0, 0] : f32 from vector<1x1x1xf32>
    %27 = vector.broadcast %26 : f32 to vector<1x1xf32>
    %28 = arith.addf %21, %27 : vector<1x1xf32>
    %c0_14 = arith.constant 0 : index
    %c0_15 = arith.constant 0 : index
    %29 = vector.load %arg6[%c0_14, %c0_15] : memref<1x1xf32, #tpu.memory_space<vmem>>, vector<1x1xf32>
    tpu.vector_store %arg6[%c0_14, %c0_15], %28 {strides = array<i32>} : memref<1x1xf32, #tpu.memory_space<vmem>>, vector<1x1xf32>,
    %c0_i32_16 = arith.constant 0 : i32
    %30 = arith.cmpi eq, %arg1, %c0_i32_16 : i32
    %31 = arith.extui %30 : i1 to i32
    %c0_i32_17 = arith.constant 0 : i32
    %32 = arith.cmpi ne, %31, %c0_i32_17 : i32
    scf.if %32 {
      %c0_18 = arith.constant 0 : index
      %c0_19 = arith.constant 0 : index
      %33 = vector.load %arg5[%c0_18, %c0_19] : memref<1x1xf32, #tpu.memory_space<vmem>>, vector<1x1xf32>
      %cst_20 = arith.constant 2.000000e+00 : f32
      %34 = vector.broadcast %cst_20 : f32 to vector<1x1xf32>
      %35 = arith.mulf %34, %33 : vector<1x1xf32>
      %cst_21 = arith.constant 9.99999993E-9 : f32
      %36 = vector.broadcast %cst_21 : f32 to vector<1x1xf32>
      %37 = arith.addf %35, %36 : vector<1x1xf32>
      %c0_22 = arith.constant 0 : index
      %c0_23 = arith.constant 0 : index
      %38 = vector.load %arg6[%c0_22, %c0_23] : memref<1x1xf32, #tpu.memory_space<vmem>>, vector<1x1xf32>
      %cst_24 = arith.constant 9.99999993E-9 : f32
      %39 = vector.broadcast %cst_24 : f32 to vector<1x1xf32>
      %40 = arith.addf %38, %39 : vector<1x1xf32>
      %41 = arith.divf %37, %40 : vector<1x1xf32>
      %42 = vector.shape_cast %41 : vector<1x1xf32> to vector<1x1x1xf32>
      %43 = vector.shape_cast %42 : vector<1x1x1xf32> to vector<1x1x1xf32>
      %44 = vector.broadcast %43 : vector<1x1x1xf32> to vector<1x8x128xf32>
      %c0_25 = arith.constant 0 : index
      %c0_26 = arith.constant 0 : index
      %c0_27 = arith.constant 0 : index
      %45 = vector.load %arg4[%c0_25, %c0_26, %c0_27] : memref<1x8x128xf32, #tpu.memory_space<vmem>>, vector<1x8x128xf32>
      tpu.vector_store %arg4[%c0_25, %c0_26, %c0_27], %44 {strides = array<i32>} : memref<1x8x128xf32, #tpu.memory_space<vmem>>, vector<1x8x128xf32>,
    } else {
    }
    return
  }
  func.func @transform_0(%arg0: i32, %arg1: i32) -> (i32, i32, i32) {
    %c0_i32 = arith.constant 0 : i32
    %c0_i32_0 = arith.constant 0 : i32
    return %arg0, %arg1, %c0_i32 : i32, i32, i32
  }
  func.func @transform_1(%arg0: i32, %arg1: i32) -> (i32, i32, i32) {
    %c0_i32 = arith.constant 0 : i32
    %c0_i32_0 = arith.constant 0 : i32
    return %arg0, %arg1, %c0_i32 : i32, i32, i32
  }
  func.func @transform_2(%arg0: i32, %arg1: i32) -> (i32, i32, i32) {
    %c0_i32 = arith.constant 0 : i32
    %c0_i32_0 = arith.constant 0 : i32
    %c0_i32_1 = arith.constant 0 : i32
    return %arg0, %c0_i32, %c0_i32_0 : i32, i32, i32
  }
}

</mosaic_0001>

<llo_original>
// kernel: tpu_custom_call.1
$region0: #{tpu_custom_call.1}
  #allocation0 [shape = 'u32[]', space=smem, size = 0x4, offset = 0x4, fixed_abs, tag = 'smem constant byte address 0x4 - core index']
  #allocation1 [shape = 'u32[144,128]{1,0:T(1,128)}', space=vmem, size = 0x12000, scoped, tag = 'internal scratch']
  #allocation2 [shape = 'f32[1,1]{1,0:T(1,128)}', space=vmem, size = 0x200, scoped, tag = 'scratch operand']
  #allocation3 [shape = 'f32[1,1]{1,0:T(1,128)}', space=vmem, size = 0x200, scoped, tag = 'scratch operand']
  %s0 = inlined_call_operand.hbm [shape: f32[2,8,128], index: 0, kind: input, shape index: {}]
  %s1 = inlined_call_operand.hbm [shape: f32[2,8,128], index: 1, kind: input, shape index: {}]
  %s2 = inlined_call_operand.hbm [shape: f32[2,8,128], index: 2, kind: output, shape index: {}]
  %s3 = sld [smem:[#allocation0]]
  $region57: #{tpu_custom_call.1} parent=0
    _
  %s5 = ssub.s32 1, %s3
  %s6 = scalar_select 0, %s5, %s3
  $region1: #{tpu_custom_call.1} parent=0
    #allocation4 [shape = 'u8[8192]{0}', space=vmem, size = 0x2000, scoped, tag = 'input window, operand 0']
    #allocation5 [shape = 's32[2]{0}', space=sflag, size = 0x8, scoped, tag = 'scoped memory for tpu_custom_call.1']
    #allocation6 [shape = 's32[2]{0}', space=sflag, size = 0x8, scoped, tag = 'scoped memory for tpu_custom_call.1']
    #allocation7 [shape = 'u8[8192]{0}', space=vmem, size = 0x2000, scoped, tag = 'input window, operand 1']
    #allocation8 [shape = 's32[2]{0}', space=sflag, size = 0x8, scoped, tag = 'scoped memory for tpu_custom_call.1']
    #allocation9 [shape = 'u8[8192]{0}', space=vmem, size = 0x2000, scoped, tag = 'output window, operand 0']
    %7 = vsyncpa [#allocation5], 0
    %s8 = scalar_lea.sflag [#allocation5], 1
    %9 = vsyncpa %s8, 0
    %10 = vsyncpa [#allocation8], 0
    %s11 = scalar_lea.sflag [#allocation8], 1
    %12 = vsyncpa %s11, 0
    %13 = vsyncpa [#allocation6], 0
    %s14 = scalar_lea.sflag [#allocation6], 1
    %15 = vsyncpa %s14, 0
    loop: start=0, step=1, limit=4
    $region2: #{tpu_custom_call.1} parent=1 // loop_pre_header
      _
    $region3: #{tpu_custom_call.1} parent=1 // loop_header
      %s17 = sphi 0, %s21
      %p18 = scmp.ge.s32.totalorder %s17, 4
      %s24 = sphi 0, %s36
      %s25 = sphi 0, %s32
      %s26 = sphi 0, %s24
      %s27 = sphi 0, %s25
      %s28 = sphi 0, %s26
      %s29 = sphi 0, %s27
      %s41 = sphi 0, %s43
      %s44 = sphi 0, %s41
      %s45 = sphi 0, %s44
      %s61 = sphi 0, %s45
      %s69 = sphi 0, %s71
      %s72 = sphi 0, %s69
      %s73 = sphi 0, %s72
      %s89 = sphi 0, %s73
      %s95 = sphi 0, %s97
      %s98 = sphi 0, %s95
      %s99 = sphi 0, %s98
      %s115 = sphi 0, %s99
    $region4: #{tpu_custom_call.1} parent=1 // loop_header_branch
      %20 = sbr.rel (%p18) target = $region8
    $region5: #{tpu_custom_call.1} parent=1 // loop_body
      %s22 = ssub.s32 %s17, 1
      %s23 = ssub.s32 %s17, 2
      %s30 = sadd.s32 1, %s25
      %p31 = scmp.ge.s32.totalorder %s30, 1
      %s32 = scalar_select %p31, 0, %s30
      %s33 = sadd.s32 1, %s24
      %s34 = scalar_select %p31, %s33, %s24
      %p35 = scmp.ge.s32.totalorder %s34, 2
      %s36 = scalar_select %p35, 0, %s34
      %s37 = ssub.s32 %s24, %s36
      %s38 = ssub.s32 %s25, %s32
      %s39 = sor.u32 %s37, %s38
      %p40 = scmp.eq.s32.totalorder %s39, 0
      %s42 = sadd.s32 %s41, 1
      %s43 = scalar_select %p40, %s41, %s42
      %p46 = pneg %p40
      %p47 = scmp.eq.s32.totalorder %s17, 1
      %p48 = por %p46, %p47
      %p49 = scmp.ne.s32.totalorder %s41, %s44
      %p50 = scmp.eq.s32.totalorder %s17, 0
      %p51 = por %p49, %p50
      %p52 = scmp.ne.s32.totalorder %s41, %s44
      %p53 = scmp.eq.s32.totalorder %s22, 1
      %p54 = por %p52, %p53
      %p55 = scmp.ne.s32.totalorder %s44, %s45
      %p56 = scmp.eq.s32.totalorder %s22, 0
      %p57 = por %p55, %p56
      %p58 = scmp.ne.s32.totalorder %s44, %s45
      %p59 = scmp.eq.s32.totalorder %s23, 1
      %p60 = por %p58, %p59
      %p62 = scmp.ne.s32.totalorder %s45, %s61
      %p63 = scmp.eq.s32.totalorder %s23, 0
      %p64 = por %p62, %p63
      %s65 = ssub.s32 %s24, %s36
      %s66 = ssub.s32 %s25, %s32
      %s67 = sor.u32 %s65, %s66
      %p68 = scmp.eq.s32.totalorder %s67, 0
      %s70 = sadd.s32 %s69, 1
      %s71 = scalar_select %p68, %s69, %s70
      %p74 = pneg %p68
      %p75 = scmp.eq.s32.totalorder %s17, 1
      %p76 = por %p74, %p75
      %p77 = scmp.ne.s32.totalorder %s69, %s72
      %p78 = scmp.eq.s32.totalorder %s17, 0
      %p79 = por %p77, %p78
      %p80 = scmp.ne.s32.totalorder %s69, %s72
      %p81 = scmp.eq.s32.totalorder %s22, 1
      %p82 = por %p80, %p81
      %p83 = scmp.ne.s32.totalorder %s72, %s73
      %p84 = scmp.eq.s32.totalorder %s22, 0
      %p85 = por %p83, %p84
      %p86 = scmp.ne.s32.totalorder %s72, %s73
      %p87 = scmp.eq.s32.totalorder %s23, 1
      %p88 = por %p86, %p87
      %p90 = scmp.ne.s32.totalorder %s73, %s89
      %p91 = scmp.eq.s32.totalorder %s23, 0
      %p92 = por %p90, %p91
      %s93 = ssub.s32 %s24, %s36
      %p94 = scmp.eq.s32.totalorder %s93, 0
      %s96 = sadd.s32 %s95, 1
      %s97 = scalar_select %p94, %s95, %s96
      %p100 = pneg %p94
      %p101 = scmp.eq.s32.totalorder %s17, 1
      %p102 = por %p100, %p101
      %p103 = scmp.ne.s32.totalorder %s95, %s98
      %p104 = scmp.eq.s32.totalorder %s17, 0
      %p105 = por %p103, %p104
      %p106 = scmp.ne.s32.totalorder %s95, %s98
      %p107 = scmp.eq.s32.totalorder %s22, 1
      %p108 = por %p106, %p107
      %p109 = scmp.ne.s32.totalorder %s98, %s99
      %p110 = scmp.eq.s32.totalorder %s22, 0
      %p111 = por %p109, %p110
      %p112 = scmp.ne.s32.totalorder %s98, %s99
      %p113 = scmp.eq.s32.totalorder %s23, 1
      %p114 = por %p112, %p113
      %p116 = scmp.ne.s32.totalorder %s99, %s115
      %p117 = scmp.eq.s32.totalorder %s23, 0
      %p118 = por %p116, %p117
      %p119 = scmp.le.s32.totalorder 1, %s17
      %p120 = scmp.lt.s32.totalorder %s17, 3
      %p121 = pnand %p119, %p120
      %p122 = pneg %p121
      // Predicated region
      $region9: #{tpu_custom_call.1} parent=5 // pred_check
        _
      $region10: #{tpu_custom_call.1} parent=5 // pred_check_branch
        %124 = sbr.rel (%p121) target = $region12
      $region11: #{tpu_custom_call.1} parent=5 // pred_region
        %s125 = ssub.s32 %s17, 1
      $region12: #{tpu_custom_call.1} parent=5 // pred_fallthru
        _
      %p126 = scmp.lt.s32.totalorder %s17, 2
      // Predicated region
      $region13: #{tpu_custom_call.1} parent=5 // pred_check
        %p127 = pneg %p126
      $region14: #{tpu_custom_call.1} parent=5 // pred_check_branch
        %129 = sbr.rel (%p127) target = $region16
      $region15: #{tpu_custom_call.1} parent=5 // pred_region
        // Predicated region
        $region17: #{tpu_custom_call.1} parent=15 // pred_check
          %p130 = pneg %p51
        $region18: #{tpu_custom_call.1} parent=15 // pred_check_branch
          %132 = sbr.rel (%p130) target = $region20
        $region19: #{tpu_custom_call.1} parent=15 // pred_region
          %s133 = sand.u32 %s41, 1
          %s134 = scalar_lea.sflag [#allocation5], %s133
          %s135 = sand.u32 %s41, 1
          %s136 = smul.addr %s135, 8
          %s137 = scalar_lea.vmem [#allocation4], %s136
          %s139 = ssub.s32 128, 128
          %140 = vsyncadd %s134, %s139
          %s141 = sadd.s32 %s25, %s24
          %s142 = smul.addr %s141, 128
          %s143 = scalar_lea.hbm %s0, %s142
          %s145 = sshll.u32 %s137, 4
          %s146 = int_to_ptr.vmem [resolvable:$true] %s145
          %148 = dma.hbm_to_vmem [thread:$0]  %s143, 128, %s146, %s134
        $region20: #{tpu_custom_call.1} parent=15 // pred_fallthru
          _
        // Predicated region
        $region21: #{tpu_custom_call.1} parent=15 // pred_check
          %p149 = pneg %p79
        $region22: #{tpu_custom_call.1} parent=15 // pred_check_branch
          %151 = sbr.rel (%p149) target = $region24
        $region23: #{tpu_custom_call.1} parent=15 // pred_region
          %s152 = sand.u32 %s69, 1
          %s153 = scalar_lea.sflag [#allocation8], %s152
          %s154 = sand.u32 %s69, 1
          %s155 = smul.addr %s154, 8
          %s156 = scalar_lea.vmem [#allocation7], %s155
          %s158 = ssub.s32 128, 128
          %159 = vsyncadd %s153, %s158
          %s160 = sadd.s32 %s25, %s24
          %s161 = smul.addr %s160, 128
          %s162 = scalar_lea.hbm %s1, %s161
          %s164 = sshll.u32 %s156, 4
          %s165 = int_to_ptr.vmem [resolvable:$true] %s164
          %167 = dma.hbm_to_vmem [thread:$0]  %s162, 128, %s165, %s153
        $region24: #{tpu_custom_call.1} parent=15 // pred_fallthru
          _
      $region16: #{tpu_custom_call.1} parent=5 // pred_fallthru
        _
      %p168 = scmp.le.s32.totalorder 1, %s17
      %p169 = scmp.lt.s32.totalorder %s17, 3
      %p170 = pnand %p168, %p169
      %p171 = pneg %p170
      // Predicated region
      $region25: #{tpu_custom_call.1} parent=5 // pred_check
        _
      $region26: #{tpu_custom_call.1} parent=5 // pred_check_branch
        %173 = sbr.rel (%p170) target = $region28
      $region27: #{tpu_custom_call.1} parent=5 // pred_region
        %s174 = ssub.s32 %s17, 1
        %s175 = sand.u32 %s44, 1
        %s176 = scalar_lea.sflag [#allocation5], %s175
        %s177 = sand.u32 %s44, 1
        %s178 = smul.addr %s177, 8
        %s179 = scalar_lea.vmem [#allocation4], %s178
        // Predicated region
        $region29: #{tpu_custom_call.1} parent=27 // pred_check
          %p180 = pneg %p57
        $region30: #{tpu_custom_call.1} parent=27 // pred_check_branch
          %182 = sbr.rel (%p180) target = $region32
        $region31: #{tpu_custom_call.1} parent=27 // pred_region
          %183 = dma.done %s176, 128
        $region32: #{tpu_custom_call.1} parent=27 // pred_fallthru
          _
        %s184 = sand.u32 %s72, 1
        %s185 = scalar_lea.sflag [#allocation8], %s184
        %s186 = sand.u32 %s72, 1
        %s187 = smul.addr %s186, 8
        %s188 = scalar_lea.vmem [#allocation7], %s187
        // Predicated region
        $region33: #{tpu_custom_call.1} parent=27 // pred_check
          %p189 = pneg %p85
        $region34: #{tpu_custom_call.1} parent=27 // pred_check_branch
          %191 = sbr.rel (%p189) target = $region36
        $region35: #{tpu_custom_call.1} parent=27 // pred_region
          %192 = dma.done %s185, 128
        $region36: #{tpu_custom_call.1} parent=27 // pred_fallthru
          _
        %s193 = sand.u32 %s44, 1
        %s194 = scalar_lea.sflag [#allocation5], %s193
        %s195 = sand.u32 %s44, 1
        %s196 = smul.addr %s195, 8
        %s197 = scalar_lea.vmem [#allocation4], %s196
        %p198 = pneg %p57
        %p199 = pneg %p54
        %s200 = sand.u32 %s72, 1
        %s201 = scalar_lea.sflag [#allocation8], %s200
        %s202 = sand.u32 %s72, 1
        %s203 = smul.addr %s202, 8
        %s204 = scalar_lea.vmem [#allocation7], %s203
        %p205 = pneg %p85
        %p206 = pneg %p82
        %p207 = pneg %p111
        %p208 = pneg %p108
        %s209 = sand.u32 %s98, 1
        %s210 = scalar_lea.sflag [#allocation6], %s209
        %s211 = sand.u32 %s98, 1
        %s212 = smul.addr %s211, 8
        %s213 = scalar_lea.vmem [#allocation9], %s212
        %p214 = scmp.eq.s32.totalorder %s27, 0
        // Predicated region
        $region37: #{tpu_custom_call.1} parent=27 // pred_check
          %p215 = pneg %p214
        $region38: #{tpu_custom_call.1} parent=27 // pred_check_branch
          %217 = sbr.rel (%p215) target = $region40
        $region39: #{tpu_custom_call.1} parent=27 // pred_region
          %vm218 = vcmask 0
          %219 = vst.msk [vmem:[#allocation2] sm:$0x1] %vm218, 0.0
          %220 = vst.msk [vmem:[#allocation3] sm:$0x1] %vm218, 0.0
        $region40: #{tpu_custom_call.1} parent=27 // pred_fallthru
          _
        %v221 = vld [vmem:[%s179] sm:$0xff]
        %v222 = vxor.u32 %v221, 2147483648
        %v223 = vmul.f32 %v222, 1.442695
        %v224 = vpow.pop %v223
        %v225 = vadd.f32 %v224, 1.0
        %v226 = vrcp.pop %v225
        %v227 = vmul.f32 1.0, %v226
        %v228 = vld [vmem:[%s188] sm:$0xff]
        %v229 = vld [vmem:[#allocation2] sm:$0x1]
        %v230 = vmul.f32 %v227, %v228
        %231 = vadd.xlane.f32.xlu0 %v230
        %v232 = vpop.xlane.xlu0 %231
        %v233 = vrot.slane %v232, 4
        %v234 = vadd.f32 %v232, %v233
        %v235 = vrot.slane %v234, 2
        %v236 = vadd.f32 %v234, %v235
        %v237 = vrot.slane %v236, 1
        %v238 = vadd.f32 %v236, %v237
        %s239 = vtos %v238
        %v240 = vstv %s239
        %v241 = vadd.f32 %v229, %v240
        %vm242 = vcmask 0
        %243 = vst.msk [vmem:[#allocation2] sm:$0x1] %vm242, %v241
        %v244 = vld [vmem:[#allocation3] sm:$0x1]
        %v245 = vadd.f32 %v227, %v228
        %246 = vadd.xlane.f32.xlu0 %v245
        %v247 = vpop.xlane.xlu0 %246
        %v248 = vrot.slane %v247, 4
        %v249 = vadd.f32 %v247, %v248
        %v250 = vrot.slane %v249, 2
        %v251 = vadd.f32 %v249, %v250
        %v252 = vrot.slane %v251, 1
        %v253 = vadd.f32 %v251, %v252
        %s254 = vtos %v253
        %v255 = vstv %s254
        %v256 = vadd.f32 %v244, %v255
        %257 = vst.msk [vmem:[#allocation3] sm:$0x1] %vm242, %v256
        // Predicated region
        $region41: #{tpu_custom_call.1} parent=27 // pred_check
          %p258 = pneg %p214
        $region42: #{tpu_custom_call.1} parent=27 // pred_check_branch
          %260 = sbr.rel (%p258) target = $region44
        $region43: #{tpu_custom_call.1} parent=27 // pred_region
          %v261 = vld [vmem:[#allocation2] sm:$0x1]
          %v262 = vmul.f32 %v261, 2.0
          %v263 = vadd.f32 %v262, 1e-08
          %v264 = vld [vmem:[#allocation3] sm:$0x1]
          %v265 = vadd.f32 %v264, 1e-08
          %v266 = vrcp.pop %v265
          %v267 = vmul.f32 %v263, %v266
          %v269 = vlaneseq
          %v270 = vshrl.u32 %v269, 7
          %v271 = vsub.s32 0, %v270
          %v272 = vrot.slane %v267, %v271
          %273 = vset.pattern.permute.xlu0 0
          %274 = vperm.xlu0 %273, %v272
          %v275 = vpop.permute.xlu0 %274
          %277 = vst [vmem:[%s213] sm:$0xff] %v275
        $region44: #{tpu_custom_call.1} parent=27 // pred_fallthru
          _
        %s278 = sand.u32 %s98, 1
        %s279 = scalar_lea.sflag [#allocation6], %s278
        %s280 = sand.u32 %s98, 1
        %s281 = smul.addr %s280, 8
        %s282 = scalar_lea.vmem [#allocation9], %s281
        // Predicated region
        $region45: #{tpu_custom_call.1} parent=27 // pred_check
          %p283 = pneg %p108
        $region46: #{tpu_custom_call.1} parent=27 // pred_check_branch
          %285 = sbr.rel (%p283) target = $region48
        $region47: #{tpu_custom_call.1} parent=27 // pred_region
          %s287 = ssub.s32 128, 128
          %288 = vsyncadd %s279, %s287
          %s289 = smul.addr %s26, 128
          %s290 = scalar_lea.hbm %s2, %s289
          %s292 = sshll.u32 %s282, 4
          %s293 = int_to_ptr.vmem [resolvable:$true] %s292
          %295 = dma.vmem_to_hbm [thread:$0]  %s293, 128, %s290, %s279
        $region48: #{tpu_custom_call.1} parent=27 // pred_fallthru
          _
      $region28: #{tpu_custom_call.1} parent=5 // pred_fallthru
        _
      %p296 = scmp.le.s32.totalorder 2, %s17
      // Predicated region
      $region49: #{tpu_custom_call.1} parent=5 // pred_check
        %p297 = pneg %p296
      $region50: #{tpu_custom_call.1} parent=5 // pred_check_branch
        %299 = sbr.rel (%p297) target = $region52
      $region51: #{tpu_custom_call.1} parent=5 // pred_region
        %s300 = ssub.s32 %s17, 2
        // Predicated region
        $region53: #{tpu_custom_call.1} parent=51 // pred_check
          %p301 = pneg %p114
        $region54: #{tpu_custom_call.1} parent=51 // pred_check_branch
          %303 = sbr.rel (%p301) target = $region56
        $region55: #{tpu_custom_call.1} parent=51 // pred_region
          %s304 = sand.u32 %s99, 1
          %s305 = scalar_lea.sflag [#allocation6], %s304
          %s306 = sand.u32 %s99, 1
          %s307 = smul.addr %s306, 8
          %s308 = scalar_lea.vmem [#allocation9], %s307
          %309 = dma.done %s305, 128
        $region56: #{tpu_custom_call.1} parent=51 // pred_fallthru
          _
      $region52: #{tpu_custom_call.1} parent=5 // pred_fallthru
        _
    $region6: #{tpu_custom_call.1} parent=1 // loop_footer
      %s21 = sadd.s32 1, %s17
    $region7: #{tpu_custom_call.1} parent=1 // loop_footer_branch
      %16 = sbr.rel target = $region3
    $region8: #{tpu_custom_call.1} parent=1 // loop_exit
      _
    %310 = vsyncpa [#allocation5], 1
    %s311 = scalar_lea.sflag [#allocation5], 1
    %312 = vsyncpa %s311, 1
    %313 = vsyncpa [#allocation8], 1
    %s314 = scalar_lea.sflag [#allocation8], 1
    %315 = vsyncpa %s314, 1
    %316 = vsyncpa [#allocation6], 1
    %s317 = scalar_lea.sflag [#allocation6], 1
    %318 = vsyncpa %s317, 1

</llo_original>
